<compile_context>
chip_gen: v7x
topology: tpu7x:2x2x1
jax: 0.10.0
libtpu: 0.0.40
codegen_flags: <defaults>
</compile_context>

<pallas_src>
import jax
import jax.numpy as jnp
from jax.experimental import pallas as pl
from jax.experimental.pallas import tpu as pltpu


def _make_layernorm_kernel(W, eps):
    # torch.std defaults to unbiased (divide by W-1); W == 1 -> NaN, like torch.
    inv_wm1 = (1.0 / (W - 1)) if W > 1 else float("nan")

    def kernel(g_ref, b_ref, x_ref, o_ref):
        # x_ref block: (rows, W); g_ref/b_ref blocks: (rows, 1)
        x = x_ref[...].astype(jnp.float32)
        mean = jnp.mean(x, axis=-1, keepdims=True)          # (rows, 1)
        diff = x - mean
        var = jnp.sum(diff * diff, axis=-1, keepdims=True) * jnp.float32(inv_wm1)
        std = jnp.sqrt(var)
        # One reciprocal per row (exact; approx would break the 1e-5 tolerance).
        inv = pl.reciprocal(std + jnp.float32(eps))          # (rows, 1)
        scale = g_ref[...] * inv                             # fold gamma into the scale
        y = diff * scale + b_ref[...]                        # 1 mul + 1 add per element
        o_ref[...] = y.astype(o_ref.dtype)

    return kernel


def _rows_per_block(num_rows, lane_width, target_bytes=2 * 1024 * 1024):
    """Largest row tile (multiple of 8) whose f32 copy is ~target_bytes, capped."""
    rows = target_bytes // (lane_width * 4)
    rows = max(8, min(int(rows), 4096))
    rows -= rows % 8
    if rows >= num_rows:
        return num_rows
    return rows


def layer_norm(x, gamma, beta, eps=1e-6):
    """Pallas TPU LayerNorm.

    x:     (B, C, H, W)   — normalization over the last axis (W) only
    gamma: (C, 1, 1)
    beta:  (C, 1, 1)
    """
    B, C, H, W = x.shape
    R = B * C * H
    itemsize = jnp.dtype(x.dtype).itemsize

    # Free, row-major reshape to a flat row view.
    x2d = x.reshape(R, W)

    # Per-row affine parameters (row r belongs to channel (r // H) % C).
    gamma_rows = jnp.broadcast_to(
        gamma.reshape(1, C, 1).astype(jnp.float32), (B, C, H)
    ).reshape(R, 1)
    beta_rows = jnp.broadcast_to(
        beta.reshape(1, C, 1).astype(jnp.float32), (B, C, H)
    ).reshape(R, 1)

    rows = _rows_per_block(R, W)
    grid = (pl.cdiv(R, rows),)

    kernel = _make_layernorm_kernel(W, eps)

    row_map = lambda i: (i, 0)
    x_spec = pl.BlockSpec((rows, W), row_map)
    p_spec = pl.BlockSpec((rows, 1), row_map)

    # Bandwidth-bound op: tell XLA roughly what it costs.
    cost = pl.CostEstimate(
        flops=int(7 * R * W),
        transcendentals=int(2 * R),
        bytes_accessed=int(2 * R * W * itemsize + 2 * R * 4),
    )

    out2d = pl.pallas_call(
        kernel,
        out_shape=jax.ShapeDtypeStruct((R, W), x.dtype),
        grid_spec=pl.GridSpec(
            grid=grid,
            in_specs=[p_spec, p_spec, x_spec],   # gamma, beta, x
            out_specs=x_spec,
        ),
        compiler_params=pltpu.CompilerParams(
            dimension_semantics=("parallel",),       # lets v7x shard rows over both TCs
            vmem_limit_bytes=32 * 1024 * 1024,       # above v5e default; blocks use ~8 MiB
        ),
        cost_estimate=cost,
    )(gamma_rows, beta_rows, x2d)

    return out2d.reshape(B, C, H, W)


def layer_norm_ref(x, gamma, beta, eps=1e-6):
    """Pure-JAX reference replicating the PyTorch forward exactly."""
    xf = x.astype(jnp.float32)
    mean = jnp.mean(xf, axis=-1, keepdims=True)
    std = jnp.std(xf, axis=-1, keepdims=True, ddof=1)   # unbiased, like torch.std
    return (gamma * (xf - mean) / (std + eps) + beta).astype(x.dtype)


if __name__ == "__main__":
    key = jax.random.PRNGKey(0)
    B, C, H, W = 2, 4, 16, 16   # features = C = 4

    kx, kg, kb = jax.random.split(key, 3)
    x = jax.random.normal(kx, (B, C, H, W), dtype=jnp.float32)

    # Module init is gamma=ones, beta=zeros; perturb so the affine part is exercised.
    gamma = jnp.ones((C, 1, 1), jnp.float32) + 0.1 * jax.random.normal(kg, (C, 1, 1))
    beta = jnp.zeros((C, 1, 1), jnp.float32) + 0.1 * jax.random.normal(kb, (C, 1, 1))

    out = layer_norm(x, gamma, beta, eps=1e-6)
    out = jax.block_until_ready(out)

    ref = layer_norm_ref(x, gamma, beta, eps=1e-6)
    assert out.shape == x.shape and out.dtype == x.dtype
    err = jnp.max(jnp.abs(out - ref))
    assert jnp.allclose(out, ref, atol=1e-5, rtol=1e-5), f"max abs err = {err}"

    print("KERNEL_OK")
</pallas_src>

<mosaic_0001>
module attributes {stable_mosaic.version = 11 : i64} {
  func.func @kernel(%arg0: i32, %arg1: memref<128x1xf32, #tpu.memory_space<vmem>>, %arg2: memref<128x1xf32, #tpu.memory_space<vmem>>, %arg3: memref<128x16xf32, #tpu.memory_space<vmem>>, %arg4: memref<128x16xf32, #tpu.memory_space<vmem>>) attributes {dimension_semantics = [#tpu.dimension_semantics<parallel>], iteration_bounds = array<i64: 1>, scalar_prefetch = 0 : i64, scratch_operands = 0 : i64, tpu.core_type = #tpu.core_type<tc>, window_params = [{transform_indices = @transform_0, window_bounds = array<i64: 128, 1>}, {transform_indices = @transform_1, window_bounds = array<i64: 128, 1>}, {transform_indices = @transform_2, window_bounds = array<i64: 128, 16>}, {transform_indices = @transform_3, window_bounds = array<i64: 128, 16>}]} {
    %c0 = arith.constant 0 : index
    %c0_0 = arith.constant 0 : index
    %0 = vector.load %arg3[%c0, %c0_0] : memref<128x16xf32, #tpu.memory_space<vmem>>, vector<128x16xf32>
    %cst = arith.constant dense<0.000000e+00> : vector<128xf32>
    %1 = vector.multi_reduction <add>, %0, %cst [1] : vector<128x16xf32> to vector<128xf32>
    %2 = vector.shape_cast %1 : vector<128xf32> to vector<128x1xf32>
    %cst_1 = arith.constant 1.600000e+01 : f32
    %3 = vector.broadcast %cst_1 : f32 to vector<128x1xf32>
    %4 = arith.divf %2, %3 : vector<128x1xf32>
    %5 = vector.broadcast %4 : vector<128x1xf32> to vector<128x16xf32>
    %6 = arith.subf %0, %5 : vector<128x16xf32>
    %7 = arith.mulf %6, %6 : vector<128x16xf32>
    %cst_2 = arith.constant dense<0.000000e+00> : vector<128xf32>
    %8 = vector.multi_reduction <add>, %7, %cst_2 [1] : vector<128x16xf32> to vector<128xf32>
    %9 = vector.shape_cast %8 : vector<128xf32> to vector<128x1xf32>
    %cst_3 = arith.constant 0.0666666701 : f32
    %10 = vector.broadcast %cst_3 : f32 to vector<128x1xf32>
    %11 = arith.mulf %9, %10 : vector<128x1xf32>
    %12 = math.sqrt %11 : vector<128x1xf32>
    %cst_4 = arith.constant 9.99999997E-7 : f32
    %13 = vector.broadcast %cst_4 : f32 to vector<128x1xf32>
    %14 = arith.addf %12, %13 : vector<128x1xf32>
    %15 = tpu.reciprocal %14 : vector<128x1xf32> -> vector<128x1xf32>
    %c0_5 = arith.constant 0 : index
    %c0_6 = arith.constant 0 : index
    %16 = vector.load %arg1[%c0_5, %c0_6] : memref<128x1xf32, #tpu.memory_space<vmem>>, vector<128x1xf32>
    %17 = arith.mulf %16, %15 : vector<128x1xf32>
    %18 = vector.broadcast %17 : vector<128x1xf32> to vector<128x16xf32>
    %19 = arith.mulf %6, %18 : vector<128x16xf32>
    %c0_7 = arith.constant 0 : index
    %c0_8 = arith.constant 0 : index
    %20 = vector.load %arg2[%c0_7, %c0_8] : memref<128x1xf32, #tpu.memory_space<vmem>>, vector<128x1xf32>
    %21 = vector.broadcast %20 : vector<128x1xf32> to vector<128x16xf32>
    %22 = arith.addf %19, %21 : vector<128x16xf32>
    %c0_9 = arith.constant 0 : index
    %c0_10 = arith.constant 0 : index
    %23 = vector.load %arg4[%c0_9, %c0_10] : memref<128x16xf32, #tpu.memory_space<vmem>>, vector<128x16xf32>
    tpu.vector_store %arg4[%c0_9, %c0_10], %22 {strides = array<i32>} : memref<128x16xf32, #tpu.memory_space<vmem>>, vector<128x16xf32>,
    return
  }
  func.func @transform_0(%arg0: i32) -> (i32, i32) {
    %c0_i32 = arith.constant 0 : i32
    %c0_i32_0 = arith.constant 0 : i32
    return %arg0, %c0_i32 : i32, i32
  }
  func.func @transform_1(%arg0: i32) -> (i32, i32) {
    %c0_i32 = arith.constant 0 : i32
    %c0_i32_0 = arith.constant 0 : i32
    return %arg0, %c0_i32 : i32, i32
  }
  func.func @transform_2(%arg0: i32) -> (i32, i32) {
    %c0_i32 = arith.constant 0 : i32
    %c0_i32_0 = arith.constant 0 : i32
    return %arg0, %c0_i32 : i32, i32
  }
  func.func @transform_3(%arg0: i32) -> (i32, i32) {
    %c0_i32 = arith.constant 0 : i32
    %c0_i32_0 = arith.constant 0 : i32
    return %arg0, %c0_i32 : i32, i32
  }
}

</mosaic_0001>

<llo_original>
// kernel: tpu_custom_call.1
$region0: #{tpu_custom_call.1}
  #allocation0 [shape = 'u32[]', space=smem, size = 0x4, offset = 0x4, fixed_abs, tag = 'smem constant byte address 0x4 - core index']
  #allocation1 [shape = 'u32[144,128]{1,0:T(1,128)}', space=vmem, size = 0x12000, scoped, tag = 'internal scratch']
  %s0 = inlined_call_operand.vmem [shape: f32[128,1], index: 0, kind: input, shape index: {}]
  %s1 = inlined_call_operand.vmem [shape: f32[128,1], index: 1, kind: input, shape index: {}]
  %s2 = inlined_call_operand.vmem [shape: f32[128,16], index: 2, kind: input, shape index: {}]
  %s3 = inlined_call_operand.vmem [shape: f32[128,16], index: 3, kind: output, shape index: {}]
  %s4 = sld [smem:[#allocation0]]
  $region22: #{tpu_custom_call.1} parent=0
    _
  %s6 = ssub.s32 1, %s4
  %s7 = scalar_select 0, %s6, %s4
  // Predicated region
  $region2: #{tpu_custom_call.1} parent=0 // pred_check
    _
  $region3: #{tpu_custom_call.1} parent=0 // pred_check_branch
    %9 = sbr.rel (0) target = $region5
  $region4: #{tpu_custom_call.1} parent=0 // pred_region
    _
  $region5: #{tpu_custom_call.1} parent=0 // pred_fallthru
    _
  // Predicated region
  $region6: #{tpu_custom_call.1} parent=0 // pred_check
    _
  $region7: #{tpu_custom_call.1} parent=0 // pred_check_branch
    %11 = sbr.rel (0) target = $region9
  $region8: #{tpu_custom_call.1} parent=0 // pred_region
    _
  $region9: #{tpu_custom_call.1} parent=0 // pred_fallthru
    _
  // Predicated region
  $region10: #{tpu_custom_call.1} parent=0 // pred_check
    _
  $region11: #{tpu_custom_call.1} parent=0 // pred_check_branch
    %13 = sbr.rel (0) target = $region13
  $region12: #{tpu_custom_call.1} parent=0 // pred_region
    _
  $region13: #{tpu_custom_call.1} parent=0 // pred_fallthru
    _
  %v14 = vld [vmem:[%s2] sm:$0xff]
  %v15 = vld [vmem:[%s2 + $0x8] sm:$0xff]
  %v16 = vld [vmem:[%s2 + $0x10] sm:$0xff]
  %v17 = vld [vmem:[%s2 + $0x18] sm:$0xff]
  %v18 = vld [vmem:[%s2 + $0x20] sm:$0xff]
  %v19 = vld [vmem:[%s2 + $0x28] sm:$0xff]
  %v20 = vld [vmem:[%s2 + $0x30] sm:$0xff]
  %v21 = vld [vmem:[%s2 + $0x38] sm:$0xff]
  %v22 = vld [vmem:[%s2 + $0x40] sm:$0xff]
  %v23 = vld [vmem:[%s2 + $0x48] sm:$0xff]
  %v24 = vld [vmem:[%s2 + $0x50] sm:$0xff]
  %v25 = vld [vmem:[%s2 + $0x58] sm:$0xff]
  %v26 = vld [vmem:[%s2 + $0x60] sm:$0xff]
  %v27 = vld [vmem:[%s2 + $0x68] sm:$0xff]
  %v28 = vld [vmem:[%s2 + $0x70] sm:$0xff]
  %v29 = vld [vmem:[%s2 + $0x78] sm:$0xff]
  %vm30 = vcmask 130048
  %v31 = vsel %vm30, %v14, 0.0
  %32 = vadd.xlane.f32.xlu0 %v31
  %v33 = vpop.xlane.xlu0 %32
  %v34 = vsel %vm30, %v15, 0.0
  %35 = vadd.xlane.f32.xlu0 %v34
  %v36 = vpop.xlane.xlu0 %35
  %v37 = vsel %vm30, %v16, 0.0
  %38 = vadd.xlane.f32.xlu0 %v37
  %v39 = vpop.xlane.xlu0 %38
  %v40 = vsel %vm30, %v17, 0.0
  %41 = vadd.xlane.f32.xlu0 %v40
  %v42 = vpop.xlane.xlu0 %41
  %v43 = vsel %vm30, %v18, 0.0
  %44 = vadd.xlane.f32.xlu0 %v43
  %v45 = vpop.xlane.xlu0 %44
  %v46 = vsel %vm30, %v19, 0.0
  %47 = vadd.xlane.f32.xlu0 %v46
  %v48 = vpop.xlane.xlu0 %47
  %v49 = vsel %vm30, %v20, 0.0
  %50 = vadd.xlane.f32.xlu0 %v49
  %v51 = vpop.xlane.xlu0 %50
  %v52 = vsel %vm30, %v21, 0.0
  %53 = vadd.xlane.f32.xlu0 %v52
  %v54 = vpop.xlane.xlu0 %53
  %v55 = vsel %vm30, %v22, 0.0
  %56 = vadd.xlane.f32.xlu0 %v55
  %v57 = vpop.xlane.xlu0 %56
  %v58 = vsel %vm30, %v23, 0.0
  %59 = vadd.xlane.f32.xlu0 %v58
  %v60 = vpop.xlane.xlu0 %59
  %v61 = vsel %vm30, %v24, 0.0
  %62 = vadd.xlane.f32.xlu0 %v61
  %v63 = vpop.xlane.xlu0 %62
  %v64 = vsel %vm30, %v25, 0.0
  %65 = vadd.xlane.f32.xlu0 %v64
  %v66 = vpop.xlane.xlu0 %65
  %v67 = vsel %vm30, %v26, 0.0
  %68 = vadd.xlane.f32.xlu0 %v67
  %v69 = vpop.xlane.xlu0 %68
  %v70 = vsel %vm30, %v27, 0.0
  %71 = vadd.xlane.f32.xlu0 %v70
  %v72 = vpop.xlane.xlu0 %71
  %v73 = vsel %vm30, %v28, 0.0
  %74 = vadd.xlane.f32.xlu0 %v73
  %v75 = vpop.xlane.xlu0 %74
  %v76 = vsel %vm30, %v29, 0.0
  %77 = vadd.xlane.f32.xlu0 %v76
  %v78 = vpop.xlane.xlu0 %77
  %v79 = vrcp.pop 16.0
  %v80 = vmul.f32 %v33, %v79
  %v81 = vmul.f32 %v36, %v79
  %v82 = vmul.f32 %v39, %v79
  %v83 = vmul.f32 %v42, %v79
  %v84 = vmul.f32 %v45, %v79
  %v85 = vmul.f32 %v48, %v79
  %v86 = vmul.f32 %v51, %v79
  %v87 = vmul.f32 %v54, %v79
  %v88 = vmul.f32 %v57, %v79
  %v89 = vmul.f32 %v60, %v79
  %v90 = vmul.f32 %v63, %v79
  %v91 = vmul.f32 %v66, %v79
  %v92 = vmul.f32 %v69, %v79
  %v93 = vmul.f32 %v72, %v79
  %v94 = vmul.f32 %v75, %v79
  %v95 = vmul.f32 %v78, %v79
  %v96 = vsub.f32 %v14, %v80
  %v97 = vsub.f32 %v15, %v81
  %v98 = vsub.f32 %v16, %v82
  %v99 = vsub.f32 %v17, %v83
  %v100 = vsub.f32 %v18, %v84
  %v101 = vsub.f32 %v19, %v85
  %v102 = vsub.f32 %v20, %v86
  %v103 = vsub.f32 %v21, %v87
  %v104 = vsub.f32 %v22, %v88
  %v105 = vsub.f32 %v23, %v89
  %v106 = vsub.f32 %v24, %v90
  %v107 = vsub.f32 %v25, %v91
  %v108 = vsub.f32 %v26, %v92
  %v109 = vsub.f32 %v27, %v93
  %v110 = vsub.f32 %v28, %v94
  %v111 = vsub.f32 %v29, %v95
  %v112 = vmul.f32 %v96, %v96
  %v113 = vmul.f32 %v97, %v97
  %v114 = vmul.f32 %v98, %v98
  %v115 = vmul.f32 %v99, %v99
  %v116 = vmul.f32 %v100, %v100
  %v117 = vmul.f32 %v101, %v101
  %v118 = vmul.f32 %v102, %v102
  %v119 = vmul.f32 %v103, %v103
  %v120 = vmul.f32 %v104, %v104
  %v121 = vmul.f32 %v105, %v105
  %v122 = vmul.f32 %v106, %v106
  %v123 = vmul.f32 %v107, %v107
  %v124 = vmul.f32 %v108, %v108
  %v125 = vmul.f32 %v109, %v109
  %v126 = vmul.f32 %v110, %v110
  %v127 = vmul.f32 %v111, %v111
  %v128 = vsel %vm30, %v112, 0.0
  %129 = vadd.xlane.f32.xlu0 %v128
  %v130 = vpop.xlane.xlu0 %129
  %v131 = vsel %vm30, %v113, 0.0
  %132 = vadd.xlane.f32.xlu0 %v131
  %v133 = vpop.xlane.xlu0 %132
  %v134 = vsel %vm30, %v114, 0.0
  %135 = vadd.xlane.f32.xlu0 %v134
  %v136 = vpop.xlane.xlu0 %135
  %v137 = vsel %vm30, %v115, 0.0
  %138 = vadd.xlane.f32.xlu0 %v137
  %v139 = vpop.xlane.xlu0 %138
  %v140 = vsel %vm30, %v116, 0.0
  %141 = vadd.xlane.f32.xlu0 %v140
  %v142 = vpop.xlane.xlu0 %141
  %v143 = vsel %vm30, %v117, 0.0
  %144 = vadd.xlane.f32.xlu0 %v143
  %v145 = vpop.xlane.xlu0 %144
  %v146 = vsel %vm30, %v118, 0.0
  %147 = vadd.xlane.f32.xlu0 %v146
  %v148 = vpop.xlane.xlu0 %147
  %v149 = vsel %vm30, %v119, 0.0
  %150 = vadd.xlane.f32.xlu0 %v149
  %v151 = vpop.xlane.xlu0 %150
  %v152 = vsel %vm30, %v120, 0.0
  %153 = vadd.xlane.f32.xlu0 %v152
  %v154 = vpop.xlane.xlu0 %153
  %v155 = vsel %vm30, %v121, 0.0
  %156 = vadd.xlane.f32.xlu0 %v155
  %v157 = vpop.xlane.xlu0 %156
  %v158 = vsel %vm30, %v122, 0.0
  %159 = vadd.xlane.f32.xlu0 %v158
  %v160 = vpop.xlane.xlu0 %159
  %v161 = vsel %vm30, %v123, 0.0
  %162 = vadd.xlane.f32.xlu0 %v161
  %v163 = vpop.xlane.xlu0 %162
  %v164 = vsel %vm30, %v124, 0.0
  %165 = vadd.xlane.f32.xlu0 %v164
  %v166 = vpop.xlane.xlu0 %165
  %v167 = vsel %vm30, %v125, 0.0
  %168 = vadd.xlane.f32.xlu0 %v167
  %v169 = vpop.xlane.xlu0 %168
  %v170 = vsel %vm30, %v126, 0.0
  %171 = vadd.xlane.f32.xlu0 %v170
  %v172 = vpop.xlane.xlu0 %171
  %v173 = vsel %vm30, %v127, 0.0
  %174 = vadd.xlane.f32.xlu0 %v173
  %v175 = vpop.xlane.xlu0 %174
  %v176 = vmul.f32 %v130, 0.06666667
  %v177 = vmul.f32 %v133, 0.06666667
  %v178 = vmul.f32 %v136, 0.06666667
  %v179 = vmul.f32 %v139, 0.06666667
  %v180 = vmul.f32 %v142, 0.06666667
  %v181 = vmul.f32 %v145, 0.06666667
  %v182 = vmul.f32 %v148, 0.06666667
  %v183 = vmul.f32 %v151, 0.06666667
  %v184 = vmul.f32 %v154, 0.06666667
  %v185 = vmul.f32 %v157, 0.06666667
  %v186 = vmul.f32 %v160, 0.06666667
  %v187 = vmul.f32 %v163, 0.06666667
  %v188 = vmul.f32 %v166, 0.06666667
  %v189 = vmul.f32 %v169, 0.06666667
  %v190 = vmul.f32 %v172, 0.06666667
  %v191 = vmul.f32 %v175, 0.06666667
  %v192 = vrsqrt.pop %v176
  %v193 = vmul.f32 %v176, %v192
  %vm194 = vcmp.eq.f32.partialorder %v176, inf
  %v195 = vsel %vm194, %v176, %v193
  %vm196 = vcmp.eq.f32.partialorder %v176, 0.0
  %v197 = vand.u32 %v176, 2147483648
  %v198 = vsel %vm196, %v197, %v195
  %v199 = vrsqrt.pop %v177
  %v200 = vmul.f32 %v177, %v199
  %vm201 = vcmp.eq.f32.partialorder %v177, inf
  %v202 = vsel %vm201, %v177, %v200
  %vm203 = vcmp.eq.f32.partialorder %v177, 0.0
  %v204 = vand.u32 %v177, 2147483648
  %v205 = vsel %vm203, %v204, %v202
  %v206 = vrsqrt.pop %v178
  %v207 = vmul.f32 %v178, %v206
  %vm208 = vcmp.eq.f32.partialorder %v178, inf
  %v209 = vsel %vm208, %v178, %v207
  %vm210 = vcmp.eq.f32.partialorder %v178, 0.0
  %v211 = vand.u32 %v178, 2147483648
  %v212 = vsel %vm210, %v211, %v209
  %v213 = vrsqrt.pop %v179
  %v214 = vmul.f32 %v179, %v213
  %vm215 = vcmp.eq.f32.partialorder %v179, inf
  %v216 = vsel %vm215, %v179, %v214
  %vm217 = vcmp.eq.f32.partialorder %v179, 0.0
  %v218 = vand.u32 %v179, 2147483648
  %v219 = vsel %vm217, %v218, %v216
  %v220 = vrsqrt.pop %v180
  %v221 = vmul.f32 %v180, %v220
  %vm222 = vcmp.eq.f32.partialorder %v180, inf
  %v223 = vsel %vm222, %v180, %v221
  %vm224 = vcmp.eq.f32.partialorder %v180, 0.0
  %v225 = vand.u32 %v180, 2147483648
  %v226 = vsel %vm224, %v225, %v223
  %v227 = vrsqrt.pop %v181
  %v228 = vmul.f32 %v181, %v227
  %vm229 = vcmp.eq.f32.partialorder %v181, inf
  %v230 = vsel %vm229, %v181, %v228
  %vm231 = vcmp.eq.f32.partialorder %v181, 0.0
  %v232 = vand.u32 %v181, 2147483648
  %v233 = vsel %vm231, %v232, %v230
  %v234 = vrsqrt.pop %v182
  %v235 = vmul.f32 %v182, %v234
  %vm236 = vcmp.eq.f32.partialorder %v182, inf
  %v237 = vsel %vm236, %v182, %v235
  %vm238 = vcmp.eq.f32.partialorder %v182, 0.0
  %v239 = vand.u32 %v182, 2147483648
  %v240 = vsel %vm238, %v239, %v237
  %v241 = vrsqrt.pop %v183
  %v242 = vmul.f32 %v183, %v241
  %vm243 = vcmp.eq.f32.partialorder %v183, inf
  %v244 = vsel %vm243, %v183, %v242
  %vm245 = vcmp.eq.f32.partialorder %v183, 0.0
  %v246 = vand.u32 %v183, 2147483648
  %v247 = vsel %vm245, %v246, %v244
  %v248 = vrsqrt.pop %v184
  %v249 = vmul.f32 %v184, %v248
  %vm250 = vcmp.eq.f32.partialorder %v184, inf
  %v251 = vsel %vm250, %v184, %v249
  %vm252 = vcmp.eq.f32.partialorder %v184, 0.0
  %v253 = vand.u32 %v184, 2147483648
  %v254 = vsel %vm252, %v253, %v251
  %v255 = vrsqrt.pop %v185
  %v256 = vmul.f32 %v185, %v255
  %vm257 = vcmp.eq.f32.partialorder %v185, inf
  %v258 = vsel %vm257, %v185, %v256
  %vm259 = vcmp.eq.f32.partialorder %v185, 0.0
  %v260 = vand.u32 %v185, 2147483648
  %v261 = vsel %vm259, %v260, %v258
  %v262 = vrsqrt.pop %v186
  %v263 = vmul.f32 %v186, %v262
  %vm264 = vcmp.eq.f32.partialorder %v186, inf
  %v265 = vsel %vm264, %v186, %v263
  %vm266 = vcmp.eq.f32.partialorder %v186, 0.0
  %v267 = vand.u32 %v186, 2147483648
  %v268 = vsel %vm266, %v267, %v265
  %v269 = vrsqrt.pop %v187
  %v270 = vmul.f32 %v187, %v269
  %vm271 = vcmp.eq.f32.partialorder %v187, inf
  %v272 = vsel %vm271, %v187, %v270
  %vm273 = vcmp.eq.f32.partialorder %v187, 0.0
  %v274 = vand.u32 %v187, 2147483648
  %v275 = vsel %vm273, %v274, %v272
  %v276 = vrsqrt.pop %v188
  %v277 = vmul.f32 %v188, %v276
  %vm278 = vcmp.eq.f32.partialorder %v188, inf
  %v279 = vsel %vm278, %v188, %v277
  %vm280 = vcmp.eq.f32.partialorder %v188, 0.0
  %v281 = vand.u32 %v188, 2147483648
  %v282 = vsel %vm280, %v281, %v279
  %v283 = vrsqrt.pop %v189
  %v284 = vmul.f32 %v189, %v283
  %vm285 = vcmp.eq.f32.partialorder %v189, inf
  %v286 = vsel %vm285, %v189, %v284
  %vm287 = vcmp.eq.f32.partialorder %v189, 0.0
  %v288 = vand.u32 %v189, 2147483648
  %v289 = vsel %vm287, %v288, %v286
  %v290 = vrsqrt.pop %v190
  %v291 = vmul.f32 %v190, %v290
  %vm292 = vcmp.eq.f32.partialorder %v190, inf
  %v293 = vsel %vm292, %v190, %v291
  %vm294 = vcmp.eq.f32.partialorder %v190, 0.0
  %v295 = vand.u32 %v190, 2147483648
  %v296 = vsel %vm294, %v295, %v293
  %v297 = vrsqrt.pop %v191
  %v298 = vmul.f32 %v191, %v297
  %vm299 = vcmp.eq.f32.partialorder %v191, inf
  %v300 = vsel %vm299, %v191, %v298
  %vm301 = vcmp.eq.f32.partialorder %v191, 0.0
  %v302 = vand.u32 %v191, 2147483648
  %v303 = vsel %vm301, %v302, %v300
  %v304 = vadd.f32 %v198, 1e-06
  %v305 = vadd.f32 %v205, 1e-06
  %v306 = vadd.f32 %v212, 1e-06
  %v307 = vadd.f32 %v219, 1e-06
  %v308 = vadd.f32 %v226, 1e-06
  %v309 = vadd.f32 %v233, 1e-06
  %v310 = vadd.f32 %v240, 1e-06
  %v311 = vadd.f32 %v247, 1e-06
  %v312 = vadd.f32 %v254, 1e-06
  %v313 = vadd.f32 %v261, 1e-06
  %v314 = vadd.f32 %v268, 1e-06
  %v315 = vadd.f32 %v275, 1e-06
  %v316 = vadd.f32 %v282, 1e-06
  %v317 = vadd.f32 %v289, 1e-06
  %v318 = vadd.f32 %v296, 1e-06
  %v319 = vadd.f32 %v303, 1e-06
  %v320 = vrcp.pop %v304
  %v321 = vrcp.pop %v305
  %v322 = vrcp.pop %v306
  %v323 = vrcp.pop %v307
  %v324 = vrcp.pop %v308
  %v325 = vrcp.pop %v309
  %v326 = vrcp.pop %v310
  %v327 = vrcp.pop %v311
  %v328 = vrcp.pop %v312
  %v329 = vrcp.pop %v313
  %v330 = vrcp.pop %v314
  %v331 = vrcp.pop %v315
  %v332 = vrcp.pop %v316
  %v333 = vrcp.pop %v317
  %v334 = vrcp.pop %v318
  %v335 = vrcp.pop %v319
  %v336 = vld [vmem:[%s0] sm:$0xff]
  %v337 = vld [vmem:[%s0 + $0x8] sm:$0xff]
  %v338 = vld [vmem:[%s0 + $0x10] sm:$0xff]
  %v339 = vld [vmem:[%s0 + $0x18] sm:$0xff]
  %v340 = vld [vmem:[%s0 + $0x20] sm:$0xff]
  %v341 = vld [vmem:[%s0 + $0x28] sm:$0xff]
  %v342 = vld [vmem:[%s0 + $0x30] sm:$0xff]
  %v343 = vld [vmem:[%s0 + $0x38] sm:$0xff]
  %v344 = vld [vmem:[%s0 + $0x40] sm:$0xff]
  %v345 = vld [vmem:[%s0 + $0x48] sm:$0xff]
  %v346 = vld [vmem:[%s0 + $0x50] sm:$0xff]
  %v347 = vld [vmem:[%s0 + $0x58] sm:$0xff]
  %v348 = vld [vmem:[%s0 + $0x60] sm:$0xff]
  %v349 = vld [vmem:[%s0 + $0x68] sm:$0xff]
  %v350 = vld [vmem:[%s0 + $0x70] sm:$0xff]
  %v351 = vld [vmem:[%s0 + $0x78] sm:$0xff]
  %v352 = vmul.f32 %v336, %v320
  %v353 = vmul.f32 %v337, %v321
  %v354 = vmul.f32 %v338, %v322
  %v355 = vmul.f32 %v339, %v323
  %v356 = vmul.f32 %v340, %v324
  %v357 = vmul.f32 %v341, %v325
  %v358 = vmul.f32 %v342, %v326
  %v359 = vmul.f32 %v343, %v327
  %v360 = vmul.f32 %v344, %v328
  %v361 = vmul.f32 %v345, %v329
  %v362 = vmul.f32 %v346, %v330
  %v363 = vmul.f32 %v347, %v331
  %v364 = vmul.f32 %v348, %v332
  %v365 = vmul.f32 %v349, %v333
  %v366 = vmul.f32 %v350, %v334
  %v367 = vmul.f32 %v351, %v335
  %369 = vset.pattern.permute.xlu0 0
  %370 = vperm.xlu0 %369, %v352
  %v371 = vpop.permute.xlu0 %370
  %374 = vset.pattern.permute.xlu0 0
  %375 = vperm.xlu0 %374, %v353
  %v376 = vpop.permute.xlu0 %375
  %379 = vset.pattern.permute.xlu0 0
  %380 = vperm.xlu0 %379, %v354
  %v381 = vpop.permute.xlu0 %380
  %384 = vset.pattern.permute.xlu0 0
  %385 = vperm.xlu0 %384, %v355
  %v386 = vpop.permute.xlu0 %385
  %389 = vset.pattern.permute.xlu0 0
  %390 = vperm.xlu0 %389, %v356
  %v391 = vpop.permute.xlu0 %390
  %394 = vset.pattern.permute.xlu0 0
  %395 = vperm.xlu0 %394, %v357
  %v396 = vpop.permute.xlu0 %395
  %399 = vset.pattern.permute.xlu0 0
  %400 = vperm.xlu0 %399, %v358
  %v401 = vpop.permute.xlu0 %400
  %404 = vset.pattern.permute.xlu0 0
  %405 = vperm.xlu0 %404, %v359
  %v406 = vpop.permute.xlu0 %405
  %409 = vset.pattern.permute.xlu0 0
  %410 = vperm.xlu0 %409, %v360
  %v411 = vpop.permute.xlu0 %410
  %414 = vset.pattern.permute.xlu0 0
  %415 = vperm.xlu0 %414, %v361
  %v416 = vpop.permute.xlu0 %415
  %419 = vset.pattern.permute.xlu0 0
  %420 = vperm.xlu0 %419, %v362
  %v421 = vpop.permute.xlu0 %420
  %424 = vset.pattern.permute.xlu0 0
  %425 = vperm.xlu0 %424, %v363
  %v426 = vpop.permute.xlu0 %425
  %429 = vset.pattern.permute.xlu0 0
  %430 = vperm.xlu0 %429, %v364
  %v431 = vpop.permute.xlu0 %430
  %434 = vset.pattern.permute.xlu0 0
  %435 = vperm.xlu0 %434, %v365
  %v436 = vpop.permute.xlu0 %435
  %439 = vset.pattern.permute.xlu0 0
  %440 = vperm.xlu0 %439, %v366
  %v441 = vpop.permute.xlu0 %440
  %444 = vset.pattern.permute.xlu0 0
  %445 = vperm.xlu0 %444, %v367
  %v446 = vpop.permute.xlu0 %445
  %v448 = vmul.f32 %v96, %v371
  %v449 = vmul.f32 %v97, %v376
  %v450 = vmul.f32 %v98, %v381
  %v451 = vmul.f32 %v99, %v386
  %v452 = vmul.f32 %v100, %v391
  %v453 = vmul.f32 %v101, %v396
  %v454 = vmul.f32 %v102, %v401
  %v455 = vmul.f32 %v103, %v406
  %v456 = vmul.f32 %v104, %v411
  %v457 = vmul.f32 %v105, %v416
  %v458 = vmul.f32 %v106, %v421
  %v459 = vmul.f32 %v107, %v426
  %v460 = vmul.f32 %v108, %v431
  %v461 = vmul.f32 %v109, %v436
  %v462 = vmul.f32 %v110, %v441
  %v463 = vmul.f32 %v111, %v446
  %v464 = vld [vmem:[%s1] sm:$0xff]
  %v465 = vld [vmem:[%s1 + $0x8] sm:$0xff]
  %v466 = vld [vmem:[%s1 + $0x10] sm:$0xff]
  %v467 = vld [vmem:[%s1 + $0x18] sm:$0xff]
  %v468 = vld [vmem:[%s1 + $0x20] sm:$0xff]
  %v469 = vld [vmem:[%s1 + $0x28] sm:$0xff]
  %v470 = vld [vmem:[%s1 + $0x30] sm:$0xff]
  %v471 = vld [vmem:[%s1 + $0x38] sm:$0xff]
  %v472 = vld [vmem:[%s1 + $0x40] sm:$0xff]
  %v473 = vld [vmem:[%s1 + $0x48] sm:$0xff]
  %v474 = vld [vmem:[%s1 + $0x50] sm:$0xff]
  %v475 = vld [vmem:[%s1 + $0x58] sm:$0xff]
  %v476 = vld [vmem:[%s1 + $0x60] sm:$0xff]
  %v477 = vld [vmem:[%s1 + $0x68] sm:$0xff]
  %v478 = vld [vmem:[%s1 + $0x70] sm:$0xff]
  %v479 = vld [vmem:[%s1 + $0x78] sm:$0xff]
  %481 = vset.pattern.permute.xlu0 0
  %482 = vperm.xlu0 %481, %v464
  %v483 = vpop.permute.xlu0 %482
  %486 = vset.pattern.permute.xlu0 0
  %487 = vperm.xlu0 %486, %v465
  %v488 = vpop.permute.xlu0 %487
  %491 = vset.pattern.permute.xlu0 0
  %492 = vperm.xlu0 %491, %v466
  %v493 = vpop.permute.xlu0 %492
  %496 = vset.pattern.permute.xlu0 0
  %497 = vperm.xlu0 %496, %v467
  %v498 = vpop.permute.xlu0 %497
  %501 = vset.pattern.permute.xlu0 0
  %502 = vperm.xlu0 %501, %v468
  %v503 = vpop.permute.xlu0 %502
  %506 = vset.pattern.permute.xlu0 0
  %507 = vperm.xlu0 %506, %v469
  %v508 = vpop.permute.xlu0 %507
  %511 = vset.pattern.permute.xlu0 0
  %512 = vperm.xlu0 %511, %v470
  %v513 = vpop.permute.xlu0 %512
  %516 = vset.pattern.permute.xlu0 0
  %517 = vperm.xlu0 %516, %v471
  %v518 = vpop.permute.xlu0 %517
  %521 = vset.pattern.permute.xlu0 0
  %522 = vperm.xlu0 %521, %v472
  %v523 = vpop.permute.xlu0 %522
  %526 = vset.pattern.permute.xlu0 0
  %527 = vperm.xlu0 %526, %v473
  %v528 = vpop.permute.xlu0 %527
  %531 = vset.pattern.permute.xlu0 0
  %532 = vperm.xlu0 %531, %v474
  %v533 = vpop.permute.xlu0 %532
  %536 = vset.pattern.permute.xlu0 0
  %537 = vperm.xlu0 %536, %v475
  %v538 = vpop.permute.xlu0 %537
  %541 = vset.pattern.permute.xlu0 0
  %542 = vperm.xlu0 %541, %v476
  %v543 = vpop.permute.xlu0 %542
  %546 = vset.pattern.permute.xlu0 0
  %547 = vperm.xlu0 %546, %v477
  %v548 = vpop.permute.xlu0 %547
  %551 = vset.pattern.permute.xlu0 0
  %552 = vperm.xlu0 %551, %v478
  %v553 = vpop.permute.xlu0 %552
  %556 = vset.pattern.permute.xlu0 0
  %557 = vperm.xlu0 %556, %v479
  %v558 = vpop.permute.xlu0 %557
  %v560 = vadd.f32 %v448, %v483
  %v561 = vadd.f32 %v449, %v488
  %v562 = vadd.f32 %v450, %v493
  %v563 = vadd.f32 %v451, %v498
  %v564 = vadd.f32 %v452, %v503
  %v565 = vadd.f32 %v453, %v508
  %v566 = vadd.f32 %v454, %v513
  %v567 = vadd.f32 %v455, %v518
  %v568 = vadd.f32 %v456, %v523
  %v569 = vadd.f32 %v457, %v528
  %v570 = vadd.f32 %v458, %v533
  %v571 = vadd.f32 %v459, %v538
  %v572 = vadd.f32 %v460, %v543
  %v573 = vadd.f32 %v461, %v548
  %v574 = vadd.f32 %v462, %v553
  %v575 = vadd.f32 %v463, %v558
  %576 = vst.msk [vmem:[%s3] sm:$0xff] %vm30, %v560
  %577 = vst.msk [vmem:[%s3 + $0x8] sm:$0xff] %vm30, %v561
  %578 = vst.msk [vmem:[%s3 + $0x10] sm:$0xff] %vm30, %v562
  %579 = vst.msk [vmem:[%s3 + $0x18] sm:$0xff] %vm30, %v563
  %580 = vst.msk [vmem:[%s3 + $0x20] sm:$0xff] %vm30, %v564
  %581 = vst.msk [vmem:[%s3 + $0x28] sm:$0xff] %vm30, %v565
  %582 = vst.msk [vmem:[%s3 + $0x30] sm:$0xff] %vm30, %v566
  %583 = vst.msk [vmem:[%s3 + $0x38] sm:$0xff] %vm30, %v567
  %584 = vst.msk [vmem:[%s3 + $0x40] sm:$0xff] %vm30, %v568
  %585 = vst.msk [vmem:[%s3 + $0x48] sm:$0xff] %vm30, %v569
  %586 = vst.msk [vmem:[%s3 + $0x50] sm:$0xff] %vm30, %v570
  %587 = vst.msk [vmem:[%s3 + $0x58] sm:$0xff] %vm30, %v571
  %588 = vst.msk [vmem:[%s3 + $0x60] sm:$0xff] %vm30, %v572
  %589 = vst.msk [vmem:[%s3 + $0x68] sm:$0xff] %vm30, %v573
  %590 = vst.msk [vmem:[%s3 + $0x70] sm:$0xff] %vm30, %v574
  %591 = vst.msk [vmem:[%s3 + $0x78] sm:$0xff] %vm30, %v575
  // Predicated region
  $region14: #{tpu_custom_call.1} parent=0 // pred_check
    _
  $region15: #{tpu_custom_call.1} parent=0 // pred_check_branch
    %593 = sbr.rel (0) target = $region17
  $region16: #{tpu_custom_call.1} parent=0 // pred_region
    _
  $region17: #{tpu_custom_call.1} parent=0 // pred_fallthru
    _
  // Predicated region
  $region18: #{tpu_custom_call.1} parent=0 // pred_check
    _
  $region19: #{tpu_custom_call.1} parent=0 // pred_check_branch
    %595 = sbr.rel (0) target = $region21
  $region20: #{tpu_custom_call.1} parent=0 // pred_region
    _
  $region21: #{tpu_custom_call.1} parent=0 // pred_fallthru
    _

</llo_original>
